<compile_context>
chip_gen: v5e
topology: v5e:2x2
jax: 0.10.0
libtpu: 0.0.40
codegen_flags: <defaults>
</compile_context>

<pallas_src>
import functools

import jax
import jax.numpy as jnp
from jax.experimental import pallas as pl
from jax.experimental.pallas import tpu as pltpu

_EPS = 1e-8


def pixelnorm_kernel(x_ref, o_ref, *, inv_c):
    x = x_ref[...]                                          # (tn, C), native dtype
    xf = x.astype(jnp.float32)
    ms = jnp.sum(xf * xf, axis=-1, keepdims=True) * inv_c   # mean over channels, f32
    scale = jax.lax.rsqrt(ms + _EPS)                        # (tn, 1), EUP rsqrt
    o_ref[...] = (x * scale.astype(x.dtype)).astype(o_ref.dtype)


def _pick_row_tile(rows, itemsize):
    """Fixed row tile: sublane-aligned, capped at ~2048 rows, >= 2 grid steps."""
    # Sub-32-bit dtypes pack along sublanes: 8 rows (f32), 16 (bf16), 32 (int8).
    sub = 8 * max(1, 4 // max(1, itemsize))
    cap = (2048 // sub) * sub
    if rows <= sub:
        return sub
    # Round half the rows up to a sublane multiple so small inputs still get
    # a 2-step grid (double-buffering / v7x megacore), then cap.
    half = -(-((rows + 1) // 2) // sub) * sub
    return min(cap, half)


def pixel_norm(x):
    # trans/dis.py uses PixelNorm on (B, N, C) tokens, so dim=2 is the last
    # (channel) axis -> per-row normalization over C after flattening rows.
    # TODO(synk): inputs where dim=2 is not the last axis are not handled.
    *lead, C = x.shape
    rows = 1
    for d in lead:
        rows *= d
    x2 = x.reshape(rows, C)

    tn = _pick_row_tile(rows, x.dtype.itemsize)
    grid = (pl.cdiv(rows, tn),)

    kernel = functools.partial(pixelnorm_kernel, inv_c=1.0 / C)

    cost = pl.CostEstimate(
        flops=3 * rows * C,                        # square, reduce, scale
        transcendentals=rows,                      # one rsqrt per row
        bytes_accessed=2 * rows * C * x.dtype.itemsize,
    )

    out = pl.pallas_call(
        kernel,
        out_shape=jax.ShapeDtypeStruct((rows, C), x.dtype),
        grid_spec=pltpu.PrefetchScalarGridSpec(
            num_scalar_prefetch=0,
            grid=grid,
            in_specs=[pl.BlockSpec((tn, C), lambda i: (i, 0))],
            out_specs=pl.BlockSpec((tn, C), lambda i: (i, 0)),
        ),
        compiler_params=pltpu.CompilerParams(
            dimension_semantics=("parallel",)),
        cost_estimate=cost,
    )(x2)
    return out.reshape(x.shape)


if __name__ == "__main__":
    key = jax.random.PRNGKey(0)

    def ref_fn(v):
        # Same math as the PyTorch module (dim=2 == last axis for these shapes).
        return v * jax.lax.rsqrt(jnp.mean(v * v, axis=2, keepdims=True) + _EPS)

    # Case 1: small lane-dense shape (C = 128 lanes, divisible rows).
    x1 = jax.random.normal(key, (2, 64, 128), jnp.float32)
    o1 = jax.block_until_ready(pixel_norm(x1))
    assert o1.shape == x1.shape and o1.dtype == x1.dtype
    assert jnp.allclose(o1, ref_fn(x1), atol=1e-5, rtol=1e-5)

    # Case 2: row count not divisible by the tile -> exercises the masked
    # partial last block of the cdiv grid.
    x2 = jax.random.normal(jax.random.fold_in(key, 1), (1, 67, 128), jnp.float32)
    o2 = jax.block_until_ready(pixel_norm(x2))
    assert o2.shape == x2.shape and o2.dtype == x2.dtype
    assert jnp.allclose(o2, ref_fn(x2), atol=1e-5, rtol=1e-5)

    print("KERNEL_OK")
</pallas_src>

<mosaic_0001>
module attributes {stable_mosaic.version = 11 : i64} {
  func.func @pixelnorm_kernel(%arg0: i32, %arg1: memref<64x128xf32, #tpu.memory_space<vmem>>, %arg2: memref<64x128xf32, #tpu.memory_space<vmem>>) attributes {dimension_semantics = [#tpu.dimension_semantics<parallel>], iteration_bounds = array<i64: 2>, scalar_prefetch = 0 : i64, scratch_operands = 0 : i64, tpu.core_type = #tpu.core_type<tc>, window_params = [{transform_indices = @transform_0, window_bounds = array<i64: 64, 128>}, {transform_indices = @transform_1, window_bounds = array<i64: 64, 128>}]} {
    %c0 = arith.constant 0 : index
    %c0_0 = arith.constant 0 : index
    %0 = vector.load %arg1[%c0, %c0_0] : memref<64x128xf32, #tpu.memory_space<vmem>>, vector<64x128xf32>
    %1 = arith.mulf %0, %0 : vector<64x128xf32>
    %cst = arith.constant dense<0.000000e+00> : vector<64xf32>
    %2 = vector.multi_reduction <add>, %1, %cst [1] : vector<64x128xf32> to vector<64xf32>
    %3 = vector.shape_cast %2 : vector<64xf32> to vector<64x1xf32>
    %cst_1 = arith.constant 7.812500e-03 : f32
    %4 = vector.broadcast %cst_1 : f32 to vector<64x1xf32>
    %5 = arith.mulf %3, %4 : vector<64x1xf32>
    %cst_2 = arith.constant 9.99999993E-9 : f32
    %6 = vector.broadcast %cst_2 : f32 to vector<64x1xf32>
    %7 = arith.addf %5, %6 : vector<64x1xf32>
    %8 = math.rsqrt %7 : vector<64x1xf32>
    %9 = vector.broadcast %8 : vector<64x1xf32> to vector<64x128xf32>
    %10 = arith.mulf %0, %9 : vector<64x128xf32>
    %c0_3 = arith.constant 0 : index
    %c0_4 = arith.constant 0 : index
    %11 = vector.load %arg2[%c0_3, %c0_4] : memref<64x128xf32, #tpu.memory_space<vmem>>, vector<64x128xf32>
    tpu.vector_store %arg2[%c0_3, %c0_4], %10 {strides = array<i32>} : memref<64x128xf32, #tpu.memory_space<vmem>>, vector<64x128xf32>,
    return
  }
  func.func @transform_0(%arg0: i32) -> (i32, i32) {
    %c0_i32 = arith.constant 0 : i32
    %c0_i32_0 = arith.constant 0 : i32
    return %arg0, %c0_i32 : i32, i32
  }
  func.func @transform_1(%arg0: i32) -> (i32, i32) {
    %c0_i32 = arith.constant 0 : i32
    %c0_i32_0 = arith.constant 0 : i32
    return %arg0, %c0_i32 : i32, i32
  }
}

</mosaic_0001>

<llo_original>
// kernel: tpu_custom_call.1
$region0: #{tpu_custom_call.1}
  #allocation0 [shape = 'u32[]', space=smem, size = 0x4, offset = 0x4, fixed_abs, tag = 'smem constant byte address 0x4 - core index']
  #allocation1 [shape = 'u32[72,128]{1,0:T(1,128)}', space=vmem, size = 0x9000, scoped, tag = 'internal scratch']
  %s0 = inlined_call_operand.hbm [shape: f32[128,128], index: 0, kind: input, shape index: {}]
  %s1 = inlined_call_operand.hbm [shape: f32[128,128], index: 1, kind: output, shape index: {}]
  %s2 = sld [smem:[#allocation0]]
  $region41: #{tpu_custom_call.1} parent=0
    _
  %s4 = ssub.s32 1, %s2
  %s5 = scalar_select 0, %s4, %s2
  $region1: #{tpu_custom_call.1} parent=0
    #allocation2 [shape = 'u8[65536]{0}', space=vmem, size = 0x10000, scoped, tag = 'input window, operand 0']
    #allocation3 [shape = 's32[2]{0}', space=sflag, size = 0x8, scoped, tag = 'scoped memory for tpu_custom_call.1']
    #allocation4 [shape = 's32[2]{0}', space=sflag, size = 0x8, scoped, tag = 'scoped memory for tpu_custom_call.1']
    #allocation5 [shape = 'u8[65536]{0}', space=vmem, size = 0x10000, scoped, tag = 'output window, operand 0']
    %6 = vsyncpa [#allocation3], 0
    %s7 = scalar_lea.sflag [#allocation3], 1
    %8 = vsyncpa %s7, 0
    %9 = vsyncpa [#allocation4], 0
    %s10 = scalar_lea.sflag [#allocation4], 1
    %11 = vsyncpa %s10, 0
    loop: start=0, step=1, limit=4
    $region2: #{tpu_custom_call.1} parent=1 // loop_pre_header
      _
    $region3: #{tpu_custom_call.1} parent=1 // loop_header
      %s13 = sphi 0, %s17
      %p14 = scmp.ge.s32.totalorder %s13, 4
      %s23 = sphi 0, %s25
      %s26 = sphi 0, %s23
      %s27 = sphi 0, %s26
      %s43 = sphi 0, %s27
      %s49 = sphi 0, %s51
      %s52 = sphi 0, %s49
      %s53 = sphi 0, %s52
      %s69 = sphi 0, %s53
    $region4: #{tpu_custom_call.1} parent=1 // loop_header_branch
      %16 = sbr.rel (%p14) target = $region8
    $region5: #{tpu_custom_call.1} parent=1 // loop_body
      %s18 = ssub.s32 %s13, 1
      %s19 = ssub.s32 %s13, 2
      %s20 = sadd.s32 %s13, 1
      %s21 = ssub.s32 %s13, %s20
      %p22 = scmp.eq.s32.totalorder %s21, 0
      %s24 = sadd.s32 %s23, 1
      %s25 = scalar_select %p22, %s23, %s24
      %p28 = pneg %p22
      %p29 = scmp.eq.s32.totalorder %s13, 1
      %p30 = por %p28, %p29
      %p31 = scmp.ne.s32.totalorder %s23, %s26
      %p32 = scmp.eq.s32.totalorder %s13, 0
      %p33 = por %p31, %p32
      %p34 = scmp.ne.s32.totalorder %s23, %s26
      %p35 = scmp.eq.s32.totalorder %s18, 1
      %p36 = por %p34, %p35
      %p37 = scmp.ne.s32.totalorder %s26, %s27
      %p38 = scmp.eq.s32.totalorder %s18, 0
      %p39 = por %p37, %p38
      %p40 = scmp.ne.s32.totalorder %s26, %s27
      %p41 = scmp.eq.s32.totalorder %s19, 1
      %p42 = por %p40, %p41
      %p44 = scmp.ne.s32.totalorder %s27, %s43
      %p45 = scmp.eq.s32.totalorder %s19, 0
      %p46 = por %p44, %p45
      %s47 = ssub.s32 %s13, %s20
      %p48 = scmp.eq.s32.totalorder %s47, 0
      %s50 = sadd.s32 %s49, 1
      %s51 = scalar_select %p48, %s49, %s50
      %p54 = pneg %p48
      %p55 = scmp.eq.s32.totalorder %s13, 1
      %p56 = por %p54, %p55
      %p57 = scmp.ne.s32.totalorder %s49, %s52
      %p58 = scmp.eq.s32.totalorder %s13, 0
      %p59 = por %p57, %p58
      %p60 = scmp.ne.s32.totalorder %s49, %s52
      %p61 = scmp.eq.s32.totalorder %s18, 1
      %p62 = por %p60, %p61
      %p63 = scmp.ne.s32.totalorder %s52, %s53
      %p64 = scmp.eq.s32.totalorder %s18, 0
      %p65 = por %p63, %p64
      %p66 = scmp.ne.s32.totalorder %s52, %s53
      %p67 = scmp.eq.s32.totalorder %s19, 1
      %p68 = por %p66, %p67
      %p70 = scmp.ne.s32.totalorder %s53, %s69
      %p71 = scmp.eq.s32.totalorder %s19, 0
      %p72 = por %p70, %p71
      %p73 = scmp.le.s32.totalorder 1, %s13
      %p74 = scmp.lt.s32.totalorder %s13, 3
      %p75 = pnand %p73, %p74
      %p76 = pneg %p75
      // Predicated region
      $region9: #{tpu_custom_call.1} parent=5 // pred_check
        _
      $region10: #{tpu_custom_call.1} parent=5 // pred_check_branch
        %78 = sbr.rel (%p75) target = $region12
      $region11: #{tpu_custom_call.1} parent=5 // pred_region
        %s79 = ssub.s32 %s13, 1
      $region12: #{tpu_custom_call.1} parent=5 // pred_fallthru
        _
      %p80 = scmp.lt.s32.totalorder %s13, 2
      // Predicated region
      $region13: #{tpu_custom_call.1} parent=5 // pred_check
        %p81 = pneg %p80
      $region14: #{tpu_custom_call.1} parent=5 // pred_check_branch
        %83 = sbr.rel (%p81) target = $region16
      $region15: #{tpu_custom_call.1} parent=5 // pred_region
        // Predicated region
        $region17: #{tpu_custom_call.1} parent=15 // pred_check
          %p84 = pneg %p33
        $region18: #{tpu_custom_call.1} parent=15 // pred_check_branch
          %86 = sbr.rel (%p84) target = $region20
        $region19: #{tpu_custom_call.1} parent=15 // pred_region
          %s87 = sand.u32 %s23, 1
          %s88 = scalar_lea.sflag [#allocation3], %s87
          %s89 = sand.u32 %s23, 1
          %s90 = smul.addr %s89, 64
          %s91 = scalar_lea.vmem [#allocation2], %s90
          %s92 = smul.u32 8, %s13
          %94 = vsyncadd %s88, 0
          %s95 = smul.addr %s92, 8
          %s96 = scalar_lea.hbm %s0, %s95
          %s97 = sshll.u32 %s96, 4
          %s98 = int_to_ptr.hbm [resolvable:$true] %s97
          %s99 = sshll.u32 %s91, 4
          %s100 = int_to_ptr.vmem [resolvable:$true] %s99
          %105 = dma.hbm_to_vmem [thread:$0]  %s98, 1024, %s100, %s88, 128, 128, 8
        $region20: #{tpu_custom_call.1} parent=15 // pred_fallthru
          _
      $region16: #{tpu_custom_call.1} parent=5 // pred_fallthru
        _
      %p106 = scmp.le.s32.totalorder 1, %s13
      %p107 = scmp.lt.s32.totalorder %s13, 3
      %p108 = pnand %p106, %p107
      %p109 = pneg %p108
      // Predicated region
      $region21: #{tpu_custom_call.1} parent=5 // pred_check
        _
      $region22: #{tpu_custom_call.1} parent=5 // pred_check_branch
        %111 = sbr.rel (%p108) target = $region24
      $region23: #{tpu_custom_call.1} parent=5 // pred_region
        %s112 = ssub.s32 %s13, 1
        %s113 = sand.u32 %s26, 1
        %s114 = scalar_lea.sflag [#allocation3], %s113
        %s115 = sand.u32 %s26, 1
        %s116 = smul.addr %s115, 64
        %s117 = scalar_lea.vmem [#allocation2], %s116
        // Predicated region
        $region25: #{tpu_custom_call.1} parent=23 // pred_check
          %p118 = pneg %p39
        $region26: #{tpu_custom_call.1} parent=23 // pred_check_branch
          %120 = sbr.rel (%p118) target = $region28
        $region27: #{tpu_custom_call.1} parent=23 // pred_region
          %122 = dma.done %s114, 1024
        $region28: #{tpu_custom_call.1} parent=23 // pred_fallthru
          _
        %s123 = sand.u32 %s26, 1
        %s124 = scalar_lea.sflag [#allocation3], %s123
        %s125 = sand.u32 %s26, 1
        %s126 = smul.addr %s125, 64
        %s127 = scalar_lea.vmem [#allocation2], %s126
        %p128 = pneg %p39
        %p129 = pneg %p36
        %p130 = pneg %p65
        %p131 = pneg %p62
        %s132 = sand.u32 %s52, 1
        %s133 = scalar_lea.sflag [#allocation4], %s132
        %s134 = sand.u32 %s52, 1
        %s135 = smul.addr %s134, 64
        %s136 = scalar_lea.vmem [#allocation5], %s135
        %s137 = smul.u32 8, %s18
        %s138 = smul.u32 8, %s18
        %v139 = vld [vmem:[%s117] sm:$0xff]
        %v140 = vld [vmem:[%s117 + $0x8] sm:$0xff]
        %v141 = vld [vmem:[%s117 + $0x10] sm:$0xff]
        %v142 = vld [vmem:[%s117 + $0x18] sm:$0xff]
        %v143 = vld [vmem:[%s117 + $0x20] sm:$0xff]
        %v144 = vld [vmem:[%s117 + $0x28] sm:$0xff]
        %v145 = vld [vmem:[%s117 + $0x30] sm:$0xff]
        %v146 = vld [vmem:[%s117 + $0x38] sm:$0xff]
        %v147 = vmul.f32 %v139, %v139
        %v148 = vmul.f32 %v140, %v140
        %v149 = vmul.f32 %v141, %v141
        %v150 = vmul.f32 %v142, %v142
        %v151 = vmul.f32 %v143, %v143
        %v152 = vmul.f32 %v144, %v144
        %v153 = vmul.f32 %v145, %v145
        %v154 = vmul.f32 %v146, %v146
        %155 = vadd.xlane.f32.xlu0 %v147
        %v156 = vpop.xlane.xlu0 %155
        %157 = vadd.xlane.f32.xlu0 %v148
        %v158 = vpop.xlane.xlu0 %157
        %159 = vadd.xlane.f32.xlu0 %v149
        %v160 = vpop.xlane.xlu0 %159
        %161 = vadd.xlane.f32.xlu0 %v150
        %v162 = vpop.xlane.xlu0 %161
        %163 = vadd.xlane.f32.xlu0 %v151
        %v164 = vpop.xlane.xlu0 %163
        %165 = vadd.xlane.f32.xlu0 %v152
        %v166 = vpop.xlane.xlu0 %165
        %167 = vadd.xlane.f32.xlu0 %v153
        %v168 = vpop.xlane.xlu0 %167
        %169 = vadd.xlane.f32.xlu0 %v154
        %v170 = vpop.xlane.xlu0 %169
        %v171 = vmul.f32 %v156, 0.0078125
        %v172 = vmul.f32 %v158, 0.0078125
        %v173 = vmul.f32 %v160, 0.0078125
        %v174 = vmul.f32 %v162, 0.0078125
        %v175 = vmul.f32 %v164, 0.0078125
        %v176 = vmul.f32 %v166, 0.0078125
        %v177 = vmul.f32 %v168, 0.0078125
        %v178 = vmul.f32 %v170, 0.0078125
        %v179 = vadd.f32 %v171, 1e-08
        %v180 = vadd.f32 %v172, 1e-08
        %v181 = vadd.f32 %v173, 1e-08
        %v182 = vadd.f32 %v174, 1e-08
        %v183 = vadd.f32 %v175, 1e-08
        %v184 = vadd.f32 %v176, 1e-08
        %v185 = vadd.f32 %v177, 1e-08
        %v186 = vadd.f32 %v178, 1e-08
        %v187 = vrsqrt.pop %v179
        %v188 = vmul.f32 %v187, %v179
        %v189 = vmul.f32 %v188, %v187
        %v190 = vmul.f32 0.5, %v189
        %v191 = vsub.f32 1.5, %v190
        %v192 = vmul.f32 %v187, %v191
        %vm193 = vweird.f32 %v179
        %vm194 = vweird.f32 %v187
        %vm195 = vmor %vm193, %vm194
        %v196 = vsel %vm195, %v187, %v192
        %v197 = vrsqrt.pop %v180
        %v198 = vmul.f32 %v197, %v180
        %v199 = vmul.f32 %v198, %v197
        %v200 = vmul.f32 0.5, %v199
        %v201 = vsub.f32 1.5, %v200
        %v202 = vmul.f32 %v197, %v201
        %vm203 = vweird.f32 %v180
        %vm204 = vweird.f32 %v197
        %vm205 = vmor %vm203, %vm204
        %v206 = vsel %vm205, %v197, %v202
        %v207 = vrsqrt.pop %v181
        %v208 = vmul.f32 %v207, %v181
        %v209 = vmul.f32 %v208, %v207
        %v210 = vmul.f32 0.5, %v209
        %v211 = vsub.f32 1.5, %v210
        %v212 = vmul.f32 %v207, %v211
        %vm213 = vweird.f32 %v181
        %vm214 = vweird.f32 %v207
        %vm215 = vmor %vm213, %vm214
        %v216 = vsel %vm215, %v207, %v212
        %v217 = vrsqrt.pop %v182
        %v218 = vmul.f32 %v217, %v182
        %v219 = vmul.f32 %v218, %v217
        %v220 = vmul.f32 0.5, %v219
        %v221 = vsub.f32 1.5, %v220
        %v222 = vmul.f32 %v217, %v221
        %vm223 = vweird.f32 %v182
        %vm224 = vweird.f32 %v217
        %vm225 = vmor %vm223, %vm224
        %v226 = vsel %vm225, %v217, %v222
        %v227 = vrsqrt.pop %v183
        %v228 = vmul.f32 %v227, %v183
        %v229 = vmul.f32 %v228, %v227
        %v230 = vmul.f32 0.5, %v229
        %v231 = vsub.f32 1.5, %v230
        %v232 = vmul.f32 %v227, %v231
        %vm233 = vweird.f32 %v183
        %vm234 = vweird.f32 %v227
        %vm235 = vmor %vm233, %vm234
        %v236 = vsel %vm235, %v227, %v232
        %v237 = vrsqrt.pop %v184
        %v238 = vmul.f32 %v237, %v184
        %v239 = vmul.f32 %v238, %v237
        %v240 = vmul.f32 0.5, %v239
        %v241 = vsub.f32 1.5, %v240
        %v242 = vmul.f32 %v237, %v241
        %vm243 = vweird.f32 %v184
        %vm244 = vweird.f32 %v237
        %vm245 = vmor %vm243, %vm244
        %v246 = vsel %vm245, %v237, %v242
        %v247 = vrsqrt.pop %v185
        %v248 = vmul.f32 %v247, %v185
        %v249 = vmul.f32 %v248, %v247
        %v250 = vmul.f32 0.5, %v249
        %v251 = vsub.f32 1.5, %v250
        %v252 = vmul.f32 %v247, %v251
        %vm253 = vweird.f32 %v185
        %vm254 = vweird.f32 %v247
        %vm255 = vmor %vm253, %vm254
        %v256 = vsel %vm255, %v247, %v252
        %v257 = vrsqrt.pop %v186
        %v258 = vmul.f32 %v257, %v186
        %v259 = vmul.f32 %v258, %v257
        %v260 = vmul.f32 0.5, %v259
        %v261 = vsub.f32 1.5, %v260
        %v262 = vmul.f32 %v257, %v261
        %vm263 = vweird.f32 %v186
        %vm264 = vweird.f32 %v257
        %vm265 = vmor %vm263, %vm264
        %v266 = vsel %vm265, %v257, %v262
        %v267 = vmul.f32 %v139, %v196
        %v268 = vmul.f32 %v140, %v206
        %v269 = vmul.f32 %v141, %v216
        %v270 = vmul.f32 %v142, %v226
        %v271 = vmul.f32 %v143, %v236
        %v272 = vmul.f32 %v144, %v246
        %v273 = vmul.f32 %v145, %v256
        %v274 = vmul.f32 %v146, %v266
        %275 = vst [vmem:[%s136] sm:$0xff] %v267
        %276 = vst [vmem:[%s136 + $0x8] sm:$0xff] %v268
        %277 = vst [vmem:[%s136 + $0x10] sm:$0xff] %v269
        %278 = vst [vmem:[%s136 + $0x18] sm:$0xff] %v270
        %279 = vst [vmem:[%s136 + $0x20] sm:$0xff] %v271
        %280 = vst [vmem:[%s136 + $0x28] sm:$0xff] %v272
        %281 = vst [vmem:[%s136 + $0x30] sm:$0xff] %v273
        %282 = vst [vmem:[%s136 + $0x38] sm:$0xff] %v274
        %s283 = sand.u32 %s52, 1
        %s284 = scalar_lea.sflag [#allocation4], %s283
        %s285 = sand.u32 %s52, 1
        %s286 = smul.addr %s285, 64
        %s287 = scalar_lea.vmem [#allocation5], %s286
        // Predicated region
        $region29: #{tpu_custom_call.1} parent=23 // pred_check
          %p288 = pneg %p62
        $region30: #{tpu_custom_call.1} parent=23 // pred_check_branch
          %290 = sbr.rel (%p288) target = $region32
        $region31: #{tpu_custom_call.1} parent=23 // pred_region
          %s291 = smul.u32 8, %s18
          %293 = vsyncadd %s284, 0
          %s294 = smul.addr %s291, 8
          %s295 = scalar_lea.hbm %s1, %s294
          %s296 = sshll.u32 %s287, 4
          %s297 = int_to_ptr.vmem [resolvable:$true] %s296
          %s298 = sshll.u32 %s295, 4
          %s299 = int_to_ptr.hbm [resolvable:$true] %s298
          %304 = dma.vmem_to_hbm [thread:$0]  %s297, 1024, %s299, %s284, 128, 128, 8
        $region32: #{tpu_custom_call.1} parent=23 // pred_fallthru
          _
      $region24: #{tpu_custom_call.1} parent=5 // pred_fallthru
        _
      %p305 = scmp.le.s32.totalorder 2, %s13
      // Predicated region
      $region33: #{tpu_custom_call.1} parent=5 // pred_check
        %p306 = pneg %p305
      $region34: #{tpu_custom_call.1} parent=5 // pred_check_branch
        %308 = sbr.rel (%p306) target = $region36
      $region35: #{tpu_custom_call.1} parent=5 // pred_region
        %s309 = ssub.s32 %s13, 2
        // Predicated region
        $region37: #{tpu_custom_call.1} parent=35 // pred_check
          %p310 = pneg %p68
        $region38: #{tpu_custom_call.1} parent=35 // pred_check_branch
          %312 = sbr.rel (%p310) target = $region40
        $region39: #{tpu_custom_call.1} parent=35 // pred_region
          %s313 = sand.u32 %s53, 1
          %s314 = scalar_lea.sflag [#allocation4], %s313
          %s315 = sand.u32 %s53, 1
          %s316 = smul.addr %s315, 64
          %s317 = scalar_lea.vmem [#allocation5], %s316
          %319 = dma.done %s314, 1024
        $region40: #{tpu_custom_call.1} parent=35 // pred_fallthru
          _
      $region36: #{tpu_custom_call.1} parent=5 // pred_fallthru
        _
    $region6: #{tpu_custom_call.1} parent=1 // loop_footer
      %s17 = sadd.s32 1, %s13
    $region7: #{tpu_custom_call.1} parent=1 // loop_footer_branch
      %12 = sbr.rel target = $region3
    $region8: #{tpu_custom_call.1} parent=1 // loop_exit
      _
    %320 = vsyncpa [#allocation3], 1
    %s321 = scalar_lea.sflag [#allocation3], 1
    %322 = vsyncpa %s321, 1
    %323 = vsyncpa [#allocation4], 1
    %s324 = scalar_lea.sflag [#allocation4], 1
    %325 = vsyncpa %s324, 1

</llo_original>
